<compile_context>
chip_gen: v7x
topology: tpu7x:2x2x1
jax: 0.10.0
libtpu: 0.0.40
codegen_flags: <defaults>
</compile_context>

<pallas_src>
import functools

import jax
import jax.numpy as jnp
from jax.experimental import pallas as pl
from jax.experimental.pallas import tpu as pltpu

_INV_SQRT2 = 0.7071067811865476  # 1/sqrt(2)


def _mlp_kernel(x_ref, w1_ref, b1_ref, w2_ref, b2_ref, o_ref, acc_ref):
    # x_ref:  (tm, D)   w1_ref: (D, tH)   b1_ref: (1, tH)
    # w2_ref: (tH, D)   b2_ref: (1, D)    o_ref:  (tm, D)   acc_ref: (tm, D) f32
    h_idx = pl.program_id(1)

    @pl.when(h_idx == 0)
    def _():
        acc_ref[...] = jnp.zeros_like(acc_ref)

    # fc1 partial over this hidden tile: (tm, D) @ (D, tH), f32 accumulation on
    # the MXU. Operands stay in their native dtype (bf16 runs at full MXU rate).
    h = jnp.dot(x_ref[...], w1_ref[...], preferred_element_type=jnp.float32)
    h = h + b1_ref[...].astype(jnp.float32)

    # Exact (erf-based) GELU, matching torch.nn.GELU(approximate='none').
    h = 0.5 * h * (1.0 + jax.lax.erf(h * _INV_SQRT2))

    # fc2 partial: (tm, tH) @ (tH, D), accumulated in VMEM scratch. Cast the
    # hidden activations back to the weight dtype so bf16 weights keep the MXU
    # at native rate (no-op for f32 weights).
    acc_ref[...] += jnp.dot(h.astype(w2_ref.dtype), w2_ref[...],
                            preferred_element_type=jnp.float32)

    @pl.when(h_idx == pl.num_programs(1) - 1)
    def _():
        o_ref[...] = (acc_ref[...]
                      + b2_ref[...].astype(jnp.float32)).astype(o_ref.dtype)


def _pick_hidden_tile(H, target):
    """Largest multiple of 128 that divides H and is <= target (or full H)."""
    if H <= target:
        return H
    t = (target // 128) * 128
    while t >= 128:
        if H % t == 0:
            return t
        t -= 128
    return H  # fallback: hidden dim not 128-divisible -> keep it whole


@functools.partial(jax.jit, static_argnames=("block_m", "block_h"))
def mlp_forward(x, w1, b1, w2, b2, *, block_m=256, block_h=512):
    """x: (..., D). Returns tensor of same shape."""
    orig_shape = x.shape
    D = orig_shape[-1]
    H = w1.shape[1]
    x2d = x.reshape(-1, D)
    M = x2d.shape[0]

    # M tile: multiple of 8 (sublane), capped at block_m; pad rows if ragged.
    tm = min(block_m, max(8, ((M + 7) // 8) * 8))
    M_pad = ((M + tm - 1) // tm) * tm
    if M_pad != M:
        # TODO(synk): replace host-side pad/slice with an in-kernel masked store
        # for ragged M to avoid the extra HBM round-trip.
        x2d = jnp.pad(x2d, ((0, M_pad - M), (0, 0)))

    th = _pick_hidden_tile(H, block_h)
    grid = (M_pad // tm, H // th)  # M axis parallel (megacore), H axis reduction

    a_bytes = jnp.dtype(x.dtype).itemsize
    w_bytes = jnp.dtype(w1.dtype).itemsize
    cost = pl.CostEstimate(
        flops=4 * M_pad * D * H,                    # two matmuls, 2*M*D*H each
        transcendentals=M_pad * H,                  # erf per hidden activation
        bytes_accessed=(2 * M_pad * D * a_bytes     # x in + y out
                        + 2 * D * H * w_bytes       # W1 + W2
                        + (H + D) * w_bytes),       # biases
    )

    out = pl.pallas_call(
        _mlp_kernel,
        out_shape=jax.ShapeDtypeStruct((M_pad, D), x.dtype),
        grid_spec=pltpu.PrefetchScalarGridSpec(
            num_scalar_prefetch=0,
            grid=grid,
            in_specs=[
                pl.BlockSpec((tm, D), lambda i, h: (i, 0)),   # x row tile
                pl.BlockSpec((D, th), lambda i, h: (0, h)),   # W1 column tile
                pl.BlockSpec((1, th), lambda i, h: (0, h)),   # b1 tile
                pl.BlockSpec((th, D), lambda i, h: (h, 0)),   # W2 row tile
                pl.BlockSpec((1, D), lambda i, h: (0, 0)),    # b2 (full)
            ],
            out_specs=pl.BlockSpec((tm, D), lambda i, h: (i, 0)),
            scratch_shapes=[pltpu.VMEM((tm, D), jnp.float32)],  # fc2 accumulator
        ),
        compiler_params=pltpu.CompilerParams(
            dimension_semantics=("parallel", "arbitrary"),
            vmem_limit_bytes=64 * 1024 * 1024,
        ),
        cost_estimate=cost,
    )(x2d, w1, b1, w2, b2)

    return out[:M].reshape(orig_shape)


def init_mlp_params(key, embedding_dimension, dtype=jnp.float32):
    """Deterministic init mirroring nn.Linear's U(-1/sqrt(fan_in), 1/sqrt(fan_in))."""
    D = embedding_dimension
    H = 3 * D
    k1, k2, k3, k4 = jax.random.split(key, 4)
    bound1 = 1.0 / jnp.sqrt(D)
    bound2 = 1.0 / jnp.sqrt(H)
    # stored as [in_features, out_features]
    w1 = jax.random.uniform(k1, (D, H), dtype, minval=-bound1, maxval=bound1)
    b1 = jax.random.uniform(k2, (1, H), dtype, minval=-bound1, maxval=bound1)
    w2 = jax.random.uniform(k3, (H, D), dtype, minval=-bound2, maxval=bound2)
    b2 = jax.random.uniform(k4, (1, D), dtype, minval=-bound2, maxval=bound2)
    return w1, b1, w2, b2


if __name__ == "__main__":
    key = jax.random.PRNGKey(0)
    kx, kp = jax.random.split(key)

    batch, seq, embed = 2, 8, 32          # hidden = 3 * embed = 96
    x = jax.random.normal(kx, (batch, seq, embed), dtype=jnp.float32)
    w1, b1, w2, b2 = init_mlp_params(kp, embed)

    y = mlp_forward(x, w1, b1, w2, b2)
    y = jax.block_until_ready(y)

    # Pure-JAX reference (same semantics as the PyTorch module).
    h_ref = x @ w1 + b1.reshape(-1)
    h_ref = 0.5 * h_ref * (1.0 + jax.lax.erf(h_ref / jnp.sqrt(2.0)))
    y_ref = h_ref @ w2 + b2.reshape(-1)

    assert y.shape == x.shape
    assert jnp.allclose(y, y_ref, atol=1e-5, rtol=1e-5)

    print("KERNEL_OK")
</pallas_src>

<mosaic_0001>
module attributes {stable_mosaic.version = 11 : i64} {
  func.func @_mlp_kernel(%arg0: i32, %arg1: i32, %arg2: memref<16x32xf32, #tpu.memory_space<vmem>>, %arg3: memref<32x96xf32, #tpu.memory_space<vmem>>, %arg4: memref<1x96xf32, #tpu.memory_space<vmem>>, %arg5: memref<96x32xf32, #tpu.memory_space<vmem>>, %arg6: memref<1x32xf32, #tpu.memory_space<vmem>>, %arg7: memref<16x32xf32, #tpu.memory_space<vmem>>, %arg8: memref<16x32xf32, #tpu.memory_space<vmem>>) attributes {dimension_semantics = [#tpu.dimension_semantics<parallel>, #tpu.dimension_semantics<arbitrary>], iteration_bounds = array<i64: 1, 1>, scalar_prefetch = 0 : i64, scratch_operands = 1 : i64, tpu.core_type = #tpu.core_type<tc>, window_params = [{transform_indices = @transform_0, window_bounds = array<i64: 16, 32>}, {transform_indices = @transform_1, window_bounds = array<i64: 32, 96>}, {transform_indices = @transform_2, window_bounds = array<i64: 1, 96>}, {transform_indices = @transform_3, window_bounds = array<i64: 96, 32>}, {pipeline_mode = #tpu.pipeline_mode<synchronous>, transform_indices = @transform_4, window_bounds = array<i64: 1, 32>}, {transform_indices = @transform_5, window_bounds = array<i64: 16, 32>}]} {
    %c0_i32 = arith.constant 0 : i32
    %0 = arith.cmpi eq, %arg1, %c0_i32 : i32
    %1 = arith.extui %0 : i1 to i32
    %c0_i32_0 = arith.constant 0 : i32
    %2 = arith.cmpi ne, %1, %c0_i32_0 : i32
    scf.if %2 {
      %cst_18 = arith.constant 0.000000e+00 : f32
      %25 = vector.broadcast %cst_18 : f32 to vector<16x32xf32>
      %c0_19 = arith.constant 0 : index
      %c0_20 = arith.constant 0 : index
      %26 = vector.load %arg8[%c0_19, %c0_20] : memref<16x32xf32, #tpu.memory_space<vmem>>, vector<16x32xf32>
      tpu.vector_store %arg8[%c0_19, %c0_20], %25 {strides = array<i32>} : memref<16x32xf32, #tpu.memory_space<vmem>>, vector<16x32xf32>,
    } else {
    }
    %c0 = arith.constant 0 : index
    %c0_1 = arith.constant 0 : index
    %3 = vector.load %arg2[%c0, %c0_1] : memref<16x32xf32, #tpu.memory_space<vmem>>, vector<16x32xf32>
    %c0_2 = arith.constant 0 : index
    %c0_3 = arith.constant 0 : index
    %4 = vector.load %arg3[%c0_2, %c0_3] : memref<32x96xf32, #tpu.memory_space<vmem>>, vector<32x96xf32>
    %cst = arith.constant dense<0.000000e+00> : vector<16x96xf32>
    %5 = tpu.matmul %3, %4, %cst {dimension_numbers = #tpu.dot_dimension_numbers<[1], [0], [0], [1], [0, 0, 1, 1], [], []>} : vector<16x32xf32>, vector<32x96xf32>, vector<16x96xf32> -> vector<16x96xf32>
    %c0_4 = arith.constant 0 : index
    %c0_5 = arith.constant 0 : index
    %6 = vector.load %arg4[%c0_4, %c0_5] : memref<1x96xf32, #tpu.memory_space<vmem>>, vector<1x96xf32>
    %7 = vector.broadcast %6 : vector<1x96xf32> to vector<16x96xf32>
    %8 = arith.addf %5, %7 : vector<16x96xf32>
    %cst_6 = arith.constant 5.000000e-01 : f32
    %9 = vector.broadcast %cst_6 : f32 to vector<16x96xf32>
    %10 = arith.mulf %9, %8 : vector<16x96xf32>
    %cst_7 = arith.constant 0.707106769 : f32
    %11 = vector.broadcast %cst_7 : f32 to vector<16x96xf32>
    %12 = arith.mulf %8, %11 : vector<16x96xf32>
    %13 = math.erf %12 : vector<16x96xf32>
    %cst_8 = arith.constant 1.000000e+00 : f32
    %14 = vector.broadcast %cst_8 : f32 to vector<16x96xf32>
    %15 = arith.addf %14, %13 : vector<16x96xf32>
    %16 = arith.mulf %10, %15 : vector<16x96xf32>
    %c0_9 = arith.constant 0 : index
    %c0_10 = arith.constant 0 : index
    %17 = vector.load %arg8[%c0_9, %c0_10] : memref<16x32xf32, #tpu.memory_space<vmem>>, vector<16x32xf32>
    %c0_11 = arith.constant 0 : index
    %c0_12 = arith.constant 0 : index
    %18 = vector.load %arg5[%c0_11, %c0_12] : memref<96x32xf32, #tpu.memory_space<vmem>>, vector<96x32xf32>
    %cst_13 = arith.constant dense<0.000000e+00> : vector<16x32xf32>
    %19 = tpu.matmul %16, %18, %cst_13 {dimension_numbers = #tpu.dot_dimension_numbers<[1], [0], [0], [1], [0, 0, 1, 1], [], []>} : vector<16x96xf32>, vector<96x32xf32>, vector<16x32xf32> -> vector<16x32xf32>
    %20 = arith.addf %17, %19 : vector<16x32xf32>
    %c0_14 = arith.constant 0 : index
    %c0_15 = arith.constant 0 : index
    %21 = vector.load %arg8[%c0_14, %c0_15] : memref<16x32xf32, #tpu.memory_space<vmem>>, vector<16x32xf32>
    tpu.vector_store %arg8[%c0_14, %c0_15], %20 {strides = array<i32>} : memref<16x32xf32, #tpu.memory_space<vmem>>, vector<16x32xf32>,
    %c0_i32_16 = arith.constant 0 : i32
    %22 = arith.cmpi eq, %arg1, %c0_i32_16 : i32
    %23 = arith.extui %22 : i1 to i32
    %c0_i32_17 = arith.constant 0 : i32
    %24 = arith.cmpi ne, %23, %c0_i32_17 : i32
    scf.if %24 {
      %c0_18 = arith.constant 0 : index
      %c0_19 = arith.constant 0 : index
      %25 = vector.load %arg8[%c0_18, %c0_19] : memref<16x32xf32, #tpu.memory_space<vmem>>, vector<16x32xf32>
      %c0_20 = arith.constant 0 : index
      %c0_21 = arith.constant 0 : index
      %26 = vector.load %arg6[%c0_20, %c0_21] : memref<1x32xf32, #tpu.memory_space<vmem>>, vector<1x32xf32>
      %27 = vector.broadcast %26 : vector<1x32xf32> to vector<16x32xf32>
      %28 = arith.addf %25, %27 : vector<16x32xf32>
      %c0_22 = arith.constant 0 : index
      %c0_23 = arith.constant 0 : index
      %29 = vector.load %arg7[%c0_22, %c0_23] : memref<16x32xf32, #tpu.memory_space<vmem>>, vector<16x32xf32>
      tpu.vector_store %arg7[%c0_22, %c0_23], %28 {strides = array<i32>} : memref<16x32xf32, #tpu.memory_space<vmem>>, vector<16x32xf32>,
    } else {
    }
    return
  }
  func.func @transform_0(%arg0: i32, %arg1: i32) -> (i32, i32) {
    %c0_i32 = arith.constant 0 : i32
    %c0_i32_0 = arith.constant 0 : i32
    return %arg0, %c0_i32 : i32, i32
  }
  func.func @transform_1(%arg0: i32, %arg1: i32) -> (i32, i32) {
    %c0_i32 = arith.constant 0 : i32
    %c0_i32_0 = arith.constant 0 : i32
    return %c0_i32, %arg1 : i32, i32
  }
  func.func @transform_2(%arg0: i32, %arg1: i32) -> (i32, i32) {
    %c0_i32 = arith.constant 0 : i32
    %c0_i32_0 = arith.constant 0 : i32
    return %c0_i32, %arg1 : i32, i32
  }
  func.func @transform_3(%arg0: i32, %arg1: i32) -> (i32, i32) {
    %c0_i32 = arith.constant 0 : i32
    %c0_i32_0 = arith.constant 0 : i32
    return %arg1, %c0_i32 : i32, i32
  }
  func.func @transform_4(%arg0: i32, %arg1: i32) -> (i32, i32) {
    %c0_i32 = arith.constant 0 : i32
    %c0_i32_0 = arith.constant 0 : i32
    %c0_i32_1 = arith.constant 0 : i32
    return %c0_i32, %c0_i32_0 : i32, i32
  }
  func.func @transform_5(%arg0: i32, %arg1: i32) -> (i32, i32) {
    %c0_i32 = arith.constant 0 : i32
    %c0_i32_0 = arith.constant 0 : i32
    return %arg0, %c0_i32 : i32, i32
  }
}

</mosaic_0001>

<llo_original>
// kernel: mlp_forward.1
$region0: #{mlp_forward.1}
  #allocation0 [shape = 'u32[]', space=smem, size = 0x4, offset = 0x4, fixed_abs, tag = 'smem constant byte address 0x4 - core index']
  #allocation1 [shape = 'u32[144,128]{1,0:T(1,128)}', space=vmem, size = 0x12000, scoped, tag = 'internal scratch']
  #allocation2 [shape = 'f32[16,32]{1,0:T(8,128)}', space=vmem, size = 0x2000, scoped, tag = 'scratch operand']
  %s0 = inlined_call_operand.hbm [shape: f32[16,32], index: 0, kind: input, shape index: {}]
  %s1 = inlined_call_operand.hbm [shape: f32[32,96], index: 1, kind: input, shape index: {}]
  %s2 = inlined_call_operand.hbm [shape: f32[1,96], index: 2, kind: input, shape index: {}]
  %s3 = inlined_call_operand.hbm [shape: f32[96,32], index: 3, kind: input, shape index: {}]
  %s4 = inlined_call_operand.hbm [shape: f32[1,32], index: 4, kind: input, shape index: {}]
  %s5 = inlined_call_operand.hbm [shape: f32[16,32], index: 5, kind: output, shape index: {}]
  %s6 = sld [smem:[#allocation0]]
  $region58: #{mlp_forward.1} parent=0
    _
  %s8 = ssub.s32 1, %s6
  %s9 = scalar_select 0, %s8, %s6
  $region1: #{mlp_forward.1} parent=0
    #allocation3 [shape = 'u8[8192]{0}', space=vmem, size = 0x2000, scoped, tag = 'input window, operand 0, single buffered']
    #allocation4 [shape = 's32[1]{0}', space=sflag, size = 0x4, scoped, tag = 'scoped memory for mlp_forward.1']
    #allocation5 [shape = 's32[1]{0}', space=sflag, size = 0x4, scoped, tag = 'scoped memory for mlp_forward.1']
    #allocation6 [shape = 'u8[16384]{0}', space=vmem, size = 0x4000, scoped, tag = 'input window, operand 1, single buffered']
    #allocation7 [shape = 's32[1]{0}', space=sflag, size = 0x4, scoped, tag = 'scoped memory for mlp_forward.1']
    #allocation8 [shape = 'u8[512]{0}', space=vmem, size = 0x400, scoped, tag = 'input window, operand 2, single buffered']
    #allocation9 [shape = 'u8[49152]{0}', space=vmem, size = 0xc000, scoped, tag = 'input window, operand 3, single buffered']
    #allocation10 [shape = 's32[1]{0}', space=sflag, size = 0x4, scoped, tag = 'scoped memory for mlp_forward.1']
    #allocation11 [shape = 'u8[512]{0}', space=vmem, size = 0x400, scoped, tag = 'input window, operand 4, single buffered']
    #allocation12 [shape = 'u8[8192]{0}', space=vmem, size = 0x2000, scoped, tag = 'output window, operand 0, single buffered']
    %10 = vsyncpa [#allocation4], 0
    %11 = vsyncpa [#allocation7], 0
    %12 = vsyncpa [#allocation10], 0
    %13 = vsyncpa [#allocation5], 0
    // Predicated region
    $region2: #{mlp_forward.1} parent=1 // pred_check
      _
    $region3: #{mlp_forward.1} parent=1 // pred_check_branch
      %15 = sbr.rel (0) target = $region5
    $region4: #{mlp_forward.1} parent=1 // pred_region
      %s17 = ssub.s32 256, 256
      %18 = vsyncadd [#allocation4], %s17
      %s19 = sshll.u32 [#allocation3], 4
      %s20 = int_to_ptr.vmem [resolvable:$true] %s19
      %25 = dma.hbm_to_vmem [thread:$0]  %s0, 256, %s20, [#allocation4], 128, 128, 8
    $region5: #{mlp_forward.1} parent=1 // pred_fallthru
      _
    // Predicated region
    $region6: #{mlp_forward.1} parent=1 // pred_check
      _
    $region7: #{mlp_forward.1} parent=1 // pred_check_branch
      %27 = sbr.rel (0) target = $region9
    $region8: #{mlp_forward.1} parent=1 // pred_region
      %s29 = ssub.s32 512, 512
      %30 = vsyncadd [#allocation7], %s29
      %s31 = sshll.u32 [#allocation6], 4
      %s32 = int_to_ptr.vmem [resolvable:$true] %s31
      %37 = dma.hbm_to_vmem [thread:$0]  %s1, 512, %s32, [#allocation7], 128, 128, 8
    $region9: #{mlp_forward.1} parent=1 // pred_fallthru
      _
    // Predicated region
    $region10: #{mlp_forward.1} parent=1 // pred_check
      _
    $region11: #{mlp_forward.1} parent=1 // pred_check_branch
      %39 = sbr.rel (0) target = $region13
    $region12: #{mlp_forward.1} parent=1 // pred_region
      %s41 = ssub.s32 16, 16
      %42 = vsyncadd [#allocation7], %s41
      %s44 = sshll.u32 [#allocation8], 4
      %s45 = int_to_ptr.vmem [resolvable:$true] %s44
      %47 = dma.hbm_to_vmem [thread:$0]  %s2, 16, %s45, [#allocation7]
    $region13: #{mlp_forward.1} parent=1 // pred_fallthru
      _
    // Predicated region
    $region14: #{mlp_forward.1} parent=1 // pred_check
      _
    $region15: #{mlp_forward.1} parent=1 // pred_check_branch
      %49 = sbr.rel (0) target = $region17
    $region16: #{mlp_forward.1} parent=1 // pred_region
      %s51 = ssub.s32 1536, 1536
      %52 = vsyncadd [#allocation10], %s51
      %s53 = sshll.u32 [#allocation9], 4
      %s54 = int_to_ptr.vmem [resolvable:$true] %s53
      %59 = dma.hbm_to_vmem [thread:$0]  %s3, 1536, %s54, [#allocation10], 128, 128, 8
    $region17: #{mlp_forward.1} parent=1 // pred_fallthru
      _
    // Predicated region
    $region18: #{mlp_forward.1} parent=1 // pred_check
      _
    $region19: #{mlp_forward.1} parent=1 // pred_check_branch
      %61 = sbr.rel (0) target = $region21
    $region20: #{mlp_forward.1} parent=1 // pred_region
      %s63 = ssub.s32 16, 16
      %64 = vsyncadd [#allocation10], %s63
      %s66 = sshll.u32 [#allocation11], 4
      %s67 = int_to_ptr.vmem [resolvable:$true] %s66
      %69 = dma.hbm_to_vmem [thread:$0]  %s4, 16, %s67, [#allocation10]
    $region21: #{mlp_forward.1} parent=1 // pred_fallthru
      _
    // Predicated region
    $region22: #{mlp_forward.1} parent=1 // pred_check
      _
    $region23: #{mlp_forward.1} parent=1 // pred_check_branch
      %71 = sbr.rel (0) target = $region25
    $region24: #{mlp_forward.1} parent=1 // pred_region
      %72 = dma.done [#allocation4], 256
    $region25: #{mlp_forward.1} parent=1 // pred_fallthru
      _
    // Predicated region
    $region26: #{mlp_forward.1} parent=1 // pred_check
      _
    $region27: #{mlp_forward.1} parent=1 // pred_check_branch
      %74 = sbr.rel (0) target = $region29
    $region28: #{mlp_forward.1} parent=1 // pred_region
      %75 = dma.done [#allocation7], 512
    $region29: #{mlp_forward.1} parent=1 // pred_fallthru
      _
    // Predicated region
    $region30: #{mlp_forward.1} parent=1 // pred_check
      _
    $region31: #{mlp_forward.1} parent=1 // pred_check_branch
      %77 = sbr.rel (0) target = $region33
    $region32: #{mlp_forward.1} parent=1 // pred_region
      %78 = dma.done [#allocation7], 16
    $region33: #{mlp_forward.1} parent=1 // pred_fallthru
      _
    // Predicated region
    $region34: #{mlp_forward.1} parent=1 // pred_check
      _
    $region35: #{mlp_forward.1} parent=1 // pred_check_branch
      %80 = sbr.rel (0) target = $region37
    $region36: #{mlp_forward.1} parent=1 // pred_region
      %81 = dma.done [#allocation10], 1536
    $region37: #{mlp_forward.1} parent=1 // pred_fallthru
      _
    // Predicated region
    $region38: #{mlp_forward.1} parent=1 // pred_check
      _
    $region39: #{mlp_forward.1} parent=1 // pred_check_branch
      %83 = sbr.rel (0) target = $region41
    $region40: #{mlp_forward.1} parent=1 // pred_region
      %84 = dma.done [#allocation10], 16
    $region41: #{mlp_forward.1} parent=1 // pred_fallthru
      _
    %p85 = scmp.eq.s32.totalorder 0, 0
    // Predicated region
    $region42: #{mlp_forward.1} parent=1 // pred_check
      %p86 = pneg %p85
    $region43: #{mlp_forward.1} parent=1 // pred_check_branch
      %88 = sbr.rel (%p86) target = $region45
    $region44: #{mlp_forward.1} parent=1 // pred_region
      %vm89 = vcmask 261120
      %90 = vst.msk [vmem:[#allocation2] sm:$0xff] %vm89, 0.0
      %91 = vst.msk [vmem:[#allocation2 + $0x8] sm:$0xff] %vm89, 0.0
    $region45: #{mlp_forward.1} parent=1 // pred_fallthru
      _
    %v92 = vld [vmem:[#allocation3] sm:$0xff]
    %v93 = vld [vmem:[#allocation3 + $0x8] sm:$0xff]
    %v94 = vld [vmem:[#allocation6] sm:$0xff]
    %v95 = vld [vmem:[#allocation6 + $0x8] sm:$0xff]
    %v96 = vld [vmem:[#allocation6 + $0x10] sm:$0xff]
    %v97 = vld [vmem:[#allocation6 + $0x18] sm:$0xff]
    %v98 = vld [vmem:[#allocation8] sm:$0x1]
    %v100 = vlaneseq
    %v101 = vshrl.u32 %v100, 7
    %v102 = vsub.s32 0, %v101
    %v103 = vrot.slane %v98, %v102
    %vm105 = vcmask 261120
    %v107 = vsel %vm105, %v92, 0
    %v110 = vsel %vm105, %v93, 0
    %112 = vmatprep.subr.mxu0 0.0
    %113 = vmatpush1.msra.mxu0 %v94
    %114 = vmatprep.subr.mxu0 0.0
    %115 = vmatpush1.msra.mxu0 %v95
    %116 = vmatprep.subr.mxu0 0.0
    %117 = vmatpush1.msra.mxu0 %v96
    %118 = vmatprep.subr.mxu0 0.0
    %119 = vmatpush1.msra.mxu0 %v97
    %120 = vmatprep.subr.mxu0 0.0
    %121 = vmatpush1.msra.mxu0 0.0
    %122 = vmatprep.subr.mxu0 0.0
    %123 = vmatpush1.msra.mxu0 0.0
    %124 = vmatprep.subr.mxu0 0.0
    %125 = vmatpush1.msra.mxu0 0.0
    %126 = vmatprep.subr.mxu0 0.0
    %127 = vmatpush1.msra.mxu0 0.0
    %128 = vmatprep.subr.mxu0 0.0
    %129 = vmatpush1.msra.mxu0 0.0
    %130 = vmatprep.subr.mxu0 0.0
    %131 = vmatpush1.msra.mxu0 0.0
    %132 = vmatprep.subr.mxu0 0.0
    %133 = vmatpush1.msra.mxu0 0.0
    %134 = vmatprep.subr.mxu0 0.0
    %135 = vmatpush1.msra.mxu0 0.0
    %136 = vmatprep.subr.mxu0 0.0
    %137 = vmatpush1.msra.mxu0 0.0
    %138 = vmatprep.subr.mxu0 0.0
    %139 = vmatpush1.msra.mxu0 0.0
    %140 = vmatprep.subr.mxu0 0.0
    %141 = vmatpush1.msra.mxu0 0.0
    %142 = vmatprep.subr.mxu0 0.0
    %143 = vmatpush1.msra.mxu0 0.0
    %144 = vmatprep.subr.mxu0 0.0
    %145 = vmatpush1.msra.mxu0 0.0
    %146 = vmatprep.subr.mxu0 0.0
    %147 = vmatpush1.msra.mxu0 0.0
    %148 = vmatprep.subr.mxu0 0.0
    %149 = vmatpush1.msra.mxu0 0.0
    %150 = vmatprep.subr.mxu0 0.0
    %151 = vmatpush1.msra.mxu0 0.0
    %152 = vmatprep.subr.mxu0 0.0
    %153 = vmatpush1.msra.mxu0 0.0
    %154 = vmatprep.subr.mxu0 0.0
    %155 = vmatpush1.msra.mxu0 0.0
    %156 = vmatprep.subr.mxu0 0.0
    %157 = vmatpush1.msra.mxu0 0.0
    %158 = vmatprep.subr.mxu0 0.0
    %159 = vmatpush1.msra.mxu0 0.0
    %160 = vmatprep.subr.mxu0 0.0
    %161 = vmatpush1.msra.mxu0 0.0
    %162 = vmatprep.subr.mxu0 0.0
    %163 = vmatpush1.msra.mxu0 0.0
    %164 = vmatprep.subr.mxu0 0.0
    %165 = vmatpush1.msra.mxu0 0.0
    %166 = vmatprep.subr.mxu0 0.0
    %167 = vmatpush1.msra.mxu0 0.0
    %168 = vmatprep.subr.mxu0 0.0
    %169 = vmatpush1.msra.mxu0 0.0
    %170 = vmatprep.subr.mxu0 0.0
    %171 = vmatpush1.msra.mxu0 0.0
    %172 = vmatprep.subr.mxu0 0.0
    %173 = vmatpush1.msra.mxu0 0.0
    %174 = vmatprep.subr.mxu0 0.0
    %175 = vmatpush1.msra.mxu0 0.0
    %176 = vmatprep.mubr.f32.mxu0 0.0
    %177 = vmatmul.mubr.f32.gmra.mrb[0].mxu0 %v107
    %v178 = vpop.f32.mrb[0].mxu0
    %v179 = vadd.f32 %v103, %v178
    %v180 = vpop.f32.mrb[0].mxu0
    %181 = vmatprep.mubr.f32.mxu0 0.0
    %182 = vmatmul.mubr.f32.gmra.mrb[0].mxu0 %v110
    %v183 = vpop.f32.mrb[0].mxu0
    %v184 = vadd.f32 %v103, %v183
    %v185 = vpop.f32.mrb[0].mxu0
    %186 = vdwg.mxu0
    %v187 = vmul.f32 %v179, 0.5
    %v188 = vmul.f32 %v184, 0.5
    %v189 = vmul.f32 %v179, 0.70710677
    %v190 = vmul.f32 %v184, 0.70710677
    %v191 = verf.f32.pop %v189
    %v192 = verf.f32.pop %v190
    %v193 = vadd.f32 %v191, 1.0
    %v194 = vadd.f32 %v192, 1.0
    %v195 = vmul.f32 %v187, %v193
    %v196 = vmul.f32 %v188, %v194
    %v197 = vld [vmem:[#allocation2] sm:$0xff]
    %v198 = vld [vmem:[#allocation2 + $0x8] sm:$0xff]
    %v199 = vld [vmem:[#allocation9] sm:$0xff]
    %v200 = vld [vmem:[#allocation9 + $0x8] sm:$0xff]
    %v201 = vld [vmem:[#allocation9 + $0x10] sm:$0xff]
    %v202 = vld [vmem:[#allocation9 + $0x18] sm:$0xff]
    %v203 = vld [vmem:[#allocation9 + $0x20] sm:$0xff]
    %v204 = vld [vmem:[#allocation9 + $0x28] sm:$0xff]
    %v205 = vld [vmem:[#allocation9 + $0x30] sm:$0xff]
    %v206 = vld [vmem:[#allocation9 + $0x38] sm:$0xff]
    %v207 = vld [vmem:[#allocation9 + $0x40] sm:$0xff]
    %v208 = vld [vmem:[#allocation9 + $0x48] sm:$0xff]
    %v209 = vld [vmem:[#allocation9 + $0x50] sm:$0xff]
    %v210 = vld [vmem:[#allocation9 + $0x58] sm:$0xff]
    %vm211 = vcmask 785408
    %v213 = vsel %vm211, %v195, 0
    %v216 = vsel %vm211, %v196, 0
    %218 = vmatprep.subr.mxu0 0.0
    %219 = vmatpush1.msra.mxu0 %v199
    %220 = vmatprep.subr.mxu0 0.0
    %221 = vmatpush1.msra.mxu0 %v200
    %222 = vmatprep.subr.mxu0 0.0
    %223 = vmatpush1.msra.mxu0 %v201
    %224 = vmatprep.subr.mxu0 0.0
    %225 = vmatpush1.msra.mxu0 %v202
    %226 = vmatprep.subr.mxu0 0.0
    %227 = vmatpush1.msra.mxu0 %v203
    %228 = vmatprep.subr.mxu0 0.0
    %229 = vmatpush1.msra.mxu0 %v204
    %230 = vmatprep.subr.mxu0 0.0
    %231 = vmatpush1.msra.mxu0 %v205
    %232 = vmatprep.subr.mxu0 0.0
    %233 = vmatpush1.msra.mxu0 %v206
    %234 = vmatprep.subr.mxu0 0.0
    %235 = vmatpush1.msra.mxu0 %v207
    %236 = vmatprep.subr.mxu0 0.0
    %237 = vmatpush1.msra.mxu0 %v208
    %238 = vmatprep.subr.mxu0 0.0
    %239 = vmatpush1.msra.mxu0 %v209
    %240 = vmatprep.subr.mxu0 0.0
    %241 = vmatpush1.msra.mxu0 %v210
    %242 = vmatprep.subr.mxu0 0.0
    %243 = vmatpush1.msra.mxu0 0.0
    %244 = vmatprep.subr.mxu0 0.0
    %245 = vmatpush1.msra.mxu0 0.0
    %246 = vmatprep.subr.mxu0 0.0
    %247 = vmatpush1.msra.mxu0 0.0
    %248 = vmatprep.subr.mxu0 0.0
    %249 = vmatpush1.msra.mxu0 0.0
    %250 = vmatprep.subr.mxu0 0.0
    %251 = vmatpush1.msra.mxu0 0.0
    %252 = vmatprep.subr.mxu0 0.0
    %253 = vmatpush1.msra.mxu0 0.0
    %254 = vmatprep.subr.mxu0 0.0
    %255 = vmatpush1.msra.mxu0 0.0
    %256 = vmatprep.subr.mxu0 0.0
    %257 = vmatpush1.msra.mxu0 0.0
    %258 = vmatprep.subr.mxu0 0.0
    %259 = vmatpush1.msra.mxu0 0.0
    %260 = vmatprep.subr.mxu0 0.0
    %261 = vmatpush1.msra.mxu0 0.0
    %262 = vmatprep.subr.mxu0 0.0
    %263 = vmatpush1.msra.mxu0 0.0
    %264 = vmatprep.subr.mxu0 0.0
    %265 = vmatpush1.msra.mxu0 0.0
    %266 = vmatprep.subr.mxu0 0.0
    %267 = vmatpush1.msra.mxu0 0.0
    %268 = vmatprep.subr.mxu0 0.0
    %269 = vmatpush1.msra.mxu0 0.0
    %270 = vmatprep.subr.mxu0 0.0
    %271 = vmatpush1.msra.mxu0 0.0
    %272 = vmatprep.subr.mxu0 0.0
    %273 = vmatpush1.msra.mxu0 0.0
    %274 = vmatprep.subr.mxu0 0.0
    %275 = vmatpush1.msra.mxu0 0.0
    %276 = vmatprep.subr.mxu0 0.0
    %277 = vmatpush1.msra.mxu0 0.0
    %278 = vmatprep.subr.mxu0 0.0
    %279 = vmatpush1.msra.mxu0 0.0
    %280 = vmatprep.subr.mxu0 0.0
    %281 = vmatpush1.msra.mxu0 0.0
    %282 = vmatprep.mubr.f32.mxu0 0.0
    %283 = vmatmul.mubr.f32.gmra.mrb[0].mxu0 %v213
    %v284 = vpop.f32.mrb[0].mxu0
    %v285 = vadd.f32 0.0, %v284
    %v286 = vpop.f32.mrb[0].mxu0
    %287 = vmatprep.mubr.f32.mxu0 0.0
    %288 = vmatmul.mubr.f32.gmra.mrb[0].mxu0 %v216
    %v289 = vpop.f32.mrb[0].mxu0
    %v290 = vadd.f32 0.0, %v289
    %v291 = vpop.f32.mrb[0].mxu0
    %292 = vdwg.mxu0
    %v293 = vadd.f32 %v197, %v285
    %v294 = vadd.f32 %v198, %v290
    %295 = vst.msk [vmem:[#allocation2] sm:$0xff] %vm105, %v293
    %296 = vst.msk [vmem:[#allocation2 + $0x8] sm:$0xff] %vm105, %v294
    // Predicated region
    $region46: #{mlp_forward.1} parent=1 // pred_check
      %p297 = pneg %p85
    $region47: #{mlp_forward.1} parent=1 // pred_check_branch
      %299 = sbr.rel (%p297) target = $region49
    $region48: #{mlp_forward.1} parent=1 // pred_region
      %v300 = vld [vmem:[#allocation2] sm:$0xff]
      %v301 = vld [vmem:[#allocation2 + $0x8] sm:$0xff]
      %v302 = vld [vmem:[#allocation11] sm:$0x1]
      %v304 = vlaneseq
      %v305 = vshrl.u32 %v304, 7
      %v306 = vsub.s32 0, %v305
      %v307 = vrot.slane %v302, %v306
      %v309 = vadd.f32 %v300, %v307
      %v310 = vadd.f32 %v301, %v307
      %311 = vst.msk [vmem:[#allocation12] sm:$0xff] %vm105, %v309
      %312 = vst.msk [vmem:[#allocation12 + $0x8] sm:$0xff] %vm105, %v310
    $region49: #{mlp_forward.1} parent=1 // pred_fallthru
      _
    // Predicated region
    $region50: #{mlp_forward.1} parent=1 // pred_check
      _
    $region51: #{mlp_forward.1} parent=1 // pred_check_branch
      %314 = sbr.rel (0) target = $region53
    $region52: #{mlp_forward.1} parent=1 // pred_region
      %s316 = ssub.s32 256, 256
      %317 = vsyncadd [#allocation5], %s316
      %s318 = sshll.u32 [#allocation12], 4
      %s319 = int_to_ptr.vmem [resolvable:$true] %s318
      %324 = dma.vmem_to_hbm [thread:$0]  %s319, 256, %s5, [#allocation5], 128, 128, 8
    $region53: #{mlp_forward.1} parent=1 // pred_fallthru
      _
    // Predicated region
    $region54: #{mlp_forward.1} parent=1 // pred_check
      _
    $region55: #{mlp_forward.1} parent=1 // pred_check_branch
      %326 = sbr.rel (0) target = $region57
    $region56: #{mlp_forward.1} parent=1 // pred_region
      %327 = dma.done [#allocation5], 256
    $region57: #{mlp_forward.1} parent=1 // pred_fallthru
      _
    %328 = vsyncpa [#allocation4], 1
    %329 = vsyncpa [#allocation7], 1
    %330 = vsyncpa [#allocation10], 1
    %331 = vsyncpa [#allocation5], 1

</llo_original>
